<compile_context>
chip_gen: v7x
topology: tpu7x:2x2x1
jax: 0.10.0
libtpu: 0.0.40
codegen_flags: <defaults>
</compile_context>

<pallas_src>
import jax
import jax.numpy as jnp
from jax.experimental import pallas as pl
from jax.experimental.pallas import tpu as pltpu


def _cdiv(a, b):
    return -(-a // b)


def _default_num_splits():
    """2-way split only on chips with 2 TensorCores (v7x); else serial loop."""
    try:
        kind = jax.devices()[0].device_kind.lower()
    except Exception:
        return 1
    return 2 if 'v7' in kind else 1


# ---------------------------------------------------------------------------
# Pallas kernel: fused multi-map map-loss + per-batch-sum statistics
# ---------------------------------------------------------------------------
def _make_bev_stats_kernel(n_maps, scale, r_total, tile_r, acc_rows,
                           tiles_per_split, need_mask):
    """Kernel over a (n_split, tiles_per_split) grid.

    Inputs : n_maps pred refs + n_maps target refs, each block (B, tile_r, 128).
    Output : (1, n_maps, B, 3) block per split, written once in the epilogue:
               [:, m, b, 0] = sum (pred - scale*target)^2
               [:, m, b, 1] = sum pred
               [:, m, b, 2] = sum target
    Scratch: one small f32 accumulator of shape (n_maps, 3, B, acc_rows, 128).
    """
    n_sub = 1 if acc_rows == tile_r else tile_r // acc_rows

    def kernel(*refs):
        pred_refs = refs[:n_maps]
        targ_refs = refs[n_maps:2 * n_maps]
        out_ref = refs[2 * n_maps]
        acc_ref = refs[2 * n_maps + 1]

        s = pl.program_id(0)
        j = pl.program_id(1)

        @pl.when(j == 0)
        def _init():
            acc_ref[...] = jnp.zeros_like(acc_ref)

        tile_start = (s * tiles_per_split + j) * tile_r

        def accumulate(mask_rows):
            if mask_rows:
                # Rows past r_total (ragged tail / clamped overhang block)
                # contribute zero to all three statistics.
                row_iota = jax.lax.broadcasted_iota(
                    jnp.int32, (tile_r, 128), 0)
                valid = ((tile_start + row_iota) < r_total)[None, :, :]
            for m in range(n_maps):
                p = pred_refs[m][...].astype(jnp.float32)
                t = targ_refs[m][...].astype(jnp.float32)
                if mask_rows:
                    p = jnp.where(valid, p, 0.0)
                    t = jnp.where(valid, t, 0.0)
                d = p - scale * t
                if n_sub == 1:
                    dd, pp, tt = d * d, p, t
                else:
                    b = p.shape[0]
                    # Layout-preserving split of the sublane axis into 8-row
                    # groups; the axis=1 sum is pure VPU vreg adds (no XLU).
                    dd = (d * d).reshape(b, n_sub, acc_rows, 128).sum(axis=1)
                    pp = p.reshape(b, n_sub, acc_rows, 128).sum(axis=1)
                    tt = t.reshape(b, n_sub, acc_rows, 128).sum(axis=1)
                # Single small RMW per (map, stat) per step.
                acc_ref[m, 0] += dd
                acc_ref[m, 1] += pp
                acc_ref[m, 2] += tt

        if need_mask:
            is_full = tile_start + tile_r <= r_total

            @pl.when(is_full)
            def _fast():
                accumulate(False)

            @pl.when(jnp.logical_not(is_full))
            def _masked():
                accumulate(True)
        else:
            accumulate(False)

        # Epilogue: tiny (B, acc_rows, 128) reduction per statistic —
        # sublane reduce first, then a single lane reduce.
        @pl.when(j == pl.num_programs(1) - 1)
        def _finalize():
            for m in range(n_maps):
                for k in range(3):
                    v = jnp.sum(acc_ref[m, k], axis=1)          # (B, 128)
                    v = jnp.sum(v, axis=1, keepdims=True)       # (B, 1)
                    out_ref[0, m, :, k:k + 1] = v

    return kernel


def _choose_tile_rows(r_total, batch, n_maps, in_bytes,
                      vmem_budget=16 * 1024 * 1024):
    """Pick the row-tile (multiple of 8) so the double-buffered input blocks
    fit a conservative VMEM budget (accumulator is now negligible)."""
    bytes_per_row = batch * 128 * (2 * n_maps * 2 * in_bytes)
    tile = max(8, vmem_budget // bytes_per_row)
    tile = min(2048, (tile // 8) * 8)
    return int(tile)


def _vmem_limit_bytes(n_maps, batch, tile_r, acc_rows, in_bytes):
    inputs = 2 * n_maps * 2 * batch * tile_r * 128 * in_bytes   # double-buffered
    scratch = n_maps * 3 * batch * acc_rows * 128 * 4
    need = int((inputs + scratch) * 1.25) + (2 << 20)           # headroom
    # Clamp: >= default scoped limits everywhere, well under v7x's 64 MiB.
    return int(min(max(need, 16 << 20), 30 << 20))


def bev_map_stats(preds, targets, magnitude_scale, *, tile_rows=None,
                  num_splits=None):
    """Fused statistics for a list of same-shape (pred, target) map pairs.

    Returns stats of shape (n_maps, B, 3):
      [m, b] = [sum (pred - scale*target)^2, sum pred, sum target].
    """
    n_maps = len(preds)
    assert n_maps >= 1 and len(targets) == n_maps
    B = preds[0].shape[0]

    # View every map as (B, R, 128); no copy when C*H*W % 128 == 0.
    # TODO(synk): feeding bf16 maps (cast happens in-kernel) would ~2x the
    # HBM-bound steady state if the model allows it.
    flats = []
    for arr in list(preds) + list(targets):
        a = arr.reshape(B, -1)
        n = a.shape[1]
        pad = (-n) % 128
        if pad:
            # Rare path (C*H*W not a multiple of 128): one pad-copy; zero
            # padding contributes 0 to all three statistics.
            a = jnp.pad(a, ((0, 0), (0, pad)))
        flats.append(a.reshape(B, -1, 128))
    r_total = flats[0].shape[1]

    in_bytes = max(a.dtype.itemsize for a in flats)
    if tile_rows is not None:
        tile_r = int(tile_rows)
    else:
        tile_r = _choose_tile_rows(r_total, B, n_maps, in_bytes)
    if tile_r < r_total:
        tile_r = max(8, (tile_r // 8) * 8)        # (8,128)-legal partial tiles
    if tile_r >= r_total:
        tile_r = r_total                          # single full-extent row tile

    # Per-vreg accumulator rows: 8 when the tile is 8-row aligned; otherwise
    # (single full-extent tile only) fall back to the whole (small) tile.
    acc_rows = 8 if (tile_r % 8 == 0) else tile_r

    n_tiles = _cdiv(r_total, tile_r)
    if num_splits is None:
        num_splits = _default_num_splits()
    n_split = max(1, min(int(num_splits), n_tiles))
    tiles_per_split = _cdiv(n_tiles, n_split)
    has_overhang = n_split * tiles_per_split > n_tiles
    need_mask = n_split * tiles_per_split * tile_r != r_total

    def in_index_map(s, j):
        idx = s * tiles_per_split + j
        if has_overhang:
            # Clamp to a valid block; the in-kernel row mask zeroes the
            # duplicated contribution.
            idx = jnp.minimum(idx, n_tiles - 1)
        return (0, idx, 0)

    kernel = _make_bev_stats_kernel(
        n_maps=n_maps, scale=float(magnitude_scale), r_total=r_total,
        tile_r=tile_r, acc_rows=acc_rows, tiles_per_split=tiles_per_split,
        need_mask=need_mask)

    out = pl.pallas_call(
        kernel,
        out_shape=jax.ShapeDtypeStruct((n_split, n_maps, B, 3), jnp.float32),
        grid_spec=pltpu.PrefetchScalarGridSpec(
            num_scalar_prefetch=0,
            grid=(n_split, tiles_per_split),
            in_specs=[pl.BlockSpec((B, tile_r, 128), in_index_map)
                      for _ in range(2 * n_maps)],
            out_specs=pl.BlockSpec((1, n_maps, B, 3),
                                   lambda s, j: (s, 0, 0, 0)),
            scratch_shapes=[
                pltpu.VMEM((n_maps, 3, B, acc_rows, 128), jnp.float32)],
        ),
        compiler_params=pltpu.CompilerParams(
            dimension_semantics=("parallel", "arbitrary"),
            vmem_limit_bytes=_vmem_limit_bytes(
                n_maps, B, tile_r, acc_rows, in_bytes)),
    )(*flats)

    return out.sum(axis=0)  # (n_maps, B, 3)


# ---------------------------------------------------------------------------
# Plain-JAX glue (tiny scalar math)
# ---------------------------------------------------------------------------
def pose_loss(pred_h, pred_a, targ_h, targ_a, height_weight):
    # TODO(synk): PoseLoss source not provided; assuming per-component L1
    # losses returned under 'pose-height' / 'pose-angle' keys (height_weight
    # applied via the outer loss_weights dict as in the original forward).
    del height_weight
    return {
        'pose-height': jnp.mean(jnp.abs(pred_h.astype(jnp.float32)
                                        - targ_h.astype(jnp.float32))),
        'pose-angle': jnp.mean(jnp.abs(pred_a.astype(jnp.float32)
                                       - targ_a.astype(jnp.float32))),
    }


def bev_loss_forward(pred_dict, target_dict, magnitude_scale, loss_weights,
                     tile_rows=None):
    """Mirror of BEVLoss.forward."""
    loss_dict = {}

    map_keys = [k for k in ['feet_map', 'head_map', 'bev_map']
                if k in pred_dict and pred_dict[k] is not None]

    # Fuse all same-shape maps into a single Pallas launch.
    groups = {}
    for k in map_keys:
        groups.setdefault(tuple(pred_dict[k].shape), []).append(k)

    for _, keys_in_group in groups.items():
        preds = [pred_dict[k] for k in keys_in_group]
        targs = [target_dict[k] for k in keys_in_group]
        stats = bev_map_stats(preds, targs, magnitude_scale,
                              tile_rows=tile_rows)          # (n_maps, B, 3)
        n_elems = preds[0].size
        for m, k in enumerate(keys_in_group):
            # TODO(synk): MagnifiedMSELoss source not provided; assuming
            # MSE(pred, magnitude_scale * target) averaged over all elements.
            loss_dict[k] = jnp.sum(stats[m, :, 0]) / n_elems
            # get_cnt(pred, magnitude_scale) and get_cnt(target, 1.0)
            pred_cnt = stats[m, :, 1] / magnitude_scale
            targ_cnt = stats[m, :, 2]
            diff = pred_cnt - targ_cnt
            loss_dict[f'{k}-cnt-mae'] = jnp.mean(jnp.abs(diff))
            loss_dict[f'{k}-cnt-mse'] = jnp.mean(diff * diff)

    if 'camera_height' in pred_dict:
        loss_dict.update(
            pose_loss(pred_dict['camera_height'], pred_dict['camera_angle'],
                      target_dict['camera_height'], target_dict['camera_angle'],
                      loss_weights['pose-height']))

    loss_all = jnp.float32(0.0)
    for k, w in loss_weights.items():
        if k in loss_dict:
            loss_all = loss_all + loss_dict[k] * w
    loss_dict['all'] = loss_all
    return loss_dict


# ---------------------------------------------------------------------------
# Pure-JAX reference (for the demo correctness check)
# ---------------------------------------------------------------------------
def bev_loss_reference(pred_dict, target_dict, magnitude_scale, loss_weights):
    loss_dict = {}
    for k in ['feet_map', 'head_map', 'bev_map']:
        if k in pred_dict and pred_dict[k] is not None:
            p = pred_dict[k].astype(jnp.float32)
            t = target_dict[k].astype(jnp.float32)
            loss_dict[k] = jnp.mean((p - magnitude_scale * t) ** 2)
            bs = p.shape[0]
            pred_cnt = (p.reshape(bs, -1) / magnitude_scale).sum(-1)
            targ_cnt = t.reshape(bs, -1).sum(-1)
            diff = pred_cnt - targ_cnt
            loss_dict[f'{k}-cnt-mae'] = jnp.mean(jnp.abs(diff))
            loss_dict[f'{k}-cnt-mse'] = jnp.mean(diff * diff)
    if 'camera_height' in pred_dict:
        loss_dict.update(
            pose_loss(pred_dict['camera_height'], pred_dict['camera_angle'],
                      target_dict['camera_height'], target_dict['camera_angle'],
                      loss_weights['pose-height']))
    loss_all = jnp.float32(0.0)
    for k, w in loss_weights.items():
        if k in loss_dict:
            loss_all = loss_all + loss_dict[k] * w
    loss_dict['all'] = loss_all
    return loss_dict


# ---------------------------------------------------------------------------
# Demo
# ---------------------------------------------------------------------------
if __name__ == "__main__":
    key = jax.random.PRNGKey(0)
    B, C, H, W = 2, 1, 16, 16
    magnitude_scale = 100.0
    loss_weights = {
        'feet_map': 1.0, 'head_map': 1.0, 'bev_map': 1.0,
        'feet_map-cnt-mae': 0.01, 'head_map-cnt-mae': 0.01,
        'bev_map-cnt-mae': 0.01,
        'feet_map-cnt-mse': 0.001, 'head_map-cnt-mse': 0.001,
        'bev_map-cnt-mse': 0.001,
        'pose-height': 0.5, 'pose-angle': 0.5,
    }

    keys = jax.random.split(key, 12)
    pred_dict = {
        'feet_map': jax.random.uniform(keys[0], (B, C, H, W), jnp.float32) * magnitude_scale,
        'head_map': jax.random.uniform(keys[1], (B, C, H, W), jnp.float32) * magnitude_scale,
        'bev_map':  jax.random.uniform(keys[2], (B, C, H, W), jnp.float32) * magnitude_scale,
        'camera_height': jax.random.uniform(keys[3], (B,), jnp.float32) * 3.0,
        'camera_angle':  jax.random.uniform(keys[4], (B,), jnp.float32),
    }
    target_dict = {
        'feet_map': jax.random.uniform(keys[5], (B, C, H, W), jnp.float32),
        'head_map': jax.random.uniform(keys[6], (B, C, H, W), jnp.float32),
        'bev_map':  jax.random.uniform(keys[7], (B, C, H, W), jnp.float32),
        'camera_height': jax.random.uniform(keys[8], (B,), jnp.float32) * 3.0,
        'camera_angle':  jax.random.uniform(keys[9], (B,), jnp.float32),
    }

    # 1) Full forward with the fused 3-map kernel (tiny single-tile path).
    out = bev_loss_forward(pred_dict, target_dict, magnitude_scale, loss_weights)
    out = jax.tree_util.tree_map(jax.block_until_ready, out)
    ref = bev_loss_reference(pred_dict, target_dict, magnitude_scale, loss_weights)
    for k in ref:
        if not bool(jnp.allclose(out[k], ref[k], rtol=1e-3, atol=1e-4)):
            raise RuntimeError(f"mismatch for '{k}': {out[k]} vs {ref[k]}")

    # 2) Multi-tile path: exercises the per-vreg accumulator, the gated
    #    unmasked/masked tile branches, the split axis and the clamped
    #    overhang block.
    B2, C2, H2, W2 = 2, 4, 48, 48   # N = 9216 -> 72 row-tiles of 128 lanes
    p2 = jax.random.uniform(keys[10], (B2, C2, H2, W2), jnp.float32) * magnitude_scale
    t2 = jax.random.uniform(keys[11], (B2, C2, H2, W2), jnp.float32)
    stats = bev_map_stats([p2], [t2], magnitude_scale, tile_rows=16, num_splits=2)
    stats = jax.block_until_ready(stats)
    pf = p2.reshape(B2, -1)
    tf = t2.reshape(B2, -1)
    ref_stats = jnp.stack([
        jnp.sum((pf - magnitude_scale * tf) ** 2, axis=1),
        jnp.sum(pf, axis=1),
        jnp.sum(tf, axis=1)], axis=-1)[None]   # (1, B2, 3)
    if not bool(jnp.allclose(stats, ref_stats, rtol=1e-3)):
        raise RuntimeError(f"stats mismatch: {stats} vs {ref_stats}")

    # 3) Same map with the auto tile / auto split path (exact-coverage,
    #    mask statically disabled, num_splits keyed off the chip kind).
    stats3 = bev_map_stats([p2], [t2], magnitude_scale)
    stats3 = jax.block_until_ready(stats3)
    if not bool(jnp.allclose(stats3, ref_stats, rtol=1e-3)):
        raise RuntimeError(f"auto-path stats mismatch: {stats3} vs {ref_stats}")

    print("KERNEL_OK")
</pallas_src>

<mosaic_0001>
module attributes {stable_mosaic.version = 11 : i64} {
  func.func @kernel(%arg0: i32, %arg1: i32, %arg2: memref<2x2x128xf32, #tpu.memory_space<vmem>>, %arg3: memref<2x2x128xf32, #tpu.memory_space<vmem>>, %arg4: memref<2x2x128xf32, #tpu.memory_space<vmem>>, %arg5: memref<2x2x128xf32, #tpu.memory_space<vmem>>, %arg6: memref<2x2x128xf32, #tpu.memory_space<vmem>>, %arg7: memref<2x2x128xf32, #tpu.memory_space<vmem>>, %arg8: memref<1x3x2x3xf32, #tpu.memory_space<vmem>>, %arg9: memref<3x3x2x2x128xf32, #tpu.memory_space<vmem>>) attributes {dimension_semantics = [#tpu.dimension_semantics<parallel>, #tpu.dimension_semantics<arbitrary>], iteration_bounds = array<i64: 1, 1>, scalar_prefetch = 0 : i64, scratch_operands = 1 : i64, tpu.core_type = #tpu.core_type<tc>, window_params = [{transform_indices = @transform_0, window_bounds = array<i64: 2, 2, 128>}, {transform_indices = @transform_1, window_bounds = array<i64: 2, 2, 128>}, {transform_indices = @transform_2, window_bounds = array<i64: 2, 2, 128>}, {transform_indices = @transform_3, window_bounds = array<i64: 2, 2, 128>}, {transform_indices = @transform_4, window_bounds = array<i64: 2, 2, 128>}, {transform_indices = @transform_5, window_bounds = array<i64: 2, 2, 128>}, {transform_indices = @transform_6, window_bounds = array<i64: 1, 3, 2, 3>}]} {
    %c0_i32 = arith.constant 0 : i32
    %0 = arith.cmpi eq, %arg1, %c0_i32 : i32
    %1 = arith.extui %0 : i1 to i32
    %c0_i32_0 = arith.constant 0 : i32
    %2 = arith.cmpi ne, %1, %c0_i32_0 : i32
    scf.if %2 {
      %cst_110 = arith.constant 0.000000e+00 : f32
      %78 = vector.broadcast %cst_110 : f32 to vector<3x3x2x2x128xf32>
      %c0_111 = arith.constant 0 : index
      %c0_112 = arith.constant 0 : index
      %c0_113 = arith.constant 0 : index
      %c0_114 = arith.constant 0 : index
      %c0_115 = arith.constant 0 : index
      %79 = vector.load %arg9[%c0_111, %c0_112, %c0_113, %c0_114, %c0_115] : memref<3x3x2x2x128xf32, #tpu.memory_space<vmem>>, vector<3x3x2x2x128xf32>
      tpu.vector_store %arg9[%c0_111, %c0_112, %c0_113, %c0_114, %c0_115], %78 {strides = array<i32>} : memref<3x3x2x2x128xf32, #tpu.memory_space<vmem>>, vector<3x3x2x2x128xf32>,
    } else {
    }
    %c0 = arith.constant 0 : index
    %c0_1 = arith.constant 0 : index
    %c0_2 = arith.constant 0 : index
    %3 = vector.load %arg2[%c0, %c0_1, %c0_2] : memref<2x2x128xf32, #tpu.memory_space<vmem>>, vector<2x2x128xf32>
    %c0_3 = arith.constant 0 : index
    %c0_4 = arith.constant 0 : index
    %c0_5 = arith.constant 0 : index
    %4 = vector.load %arg5[%c0_3, %c0_4, %c0_5] : memref<2x2x128xf32, #tpu.memory_space<vmem>>, vector<2x2x128xf32>
    %cst = arith.constant 1.000000e+02 : f32
    %5 = vector.broadcast %cst : f32 to vector<2x2x128xf32>
    %6 = arith.mulf %5, %4 : vector<2x2x128xf32>
    %7 = arith.subf %3, %6 : vector<2x2x128xf32>
    %8 = arith.mulf %7, %7 : vector<2x2x128xf32>
    %c0_6 = arith.constant 0 : index
    %c0_7 = arith.constant 0 : index
    %c0_8 = arith.constant 0 : index
    %c0_9 = arith.constant 0 : index
    %c0_10 = arith.constant 0 : index
    %9 = vector.load %arg9[%c0_6, %c0_7, %c0_8, %c0_9, %c0_10] : memref<3x3x2x2x128xf32, #tpu.memory_space<vmem>>, vector<1x1x2x2x128xf32>
    %10 = vector.shape_cast %9 : vector<1x1x2x2x128xf32> to vector<2x2x128xf32>
    %11 = arith.addf %10, %8 : vector<2x2x128xf32>
    %c0_11 = arith.constant 0 : index
    %c0_12 = arith.constant 0 : index
    %c0_13 = arith.constant 0 : index
    %c0_14 = arith.constant 0 : index
    %c0_15 = arith.constant 0 : index
    %12 = vector.load %arg9[%c0_11, %c0_12, %c0_13, %c0_14, %c0_15] : memref<3x3x2x2x128xf32, #tpu.memory_space<vmem>>, vector<1x1x2x2x128xf32>
    %13 = vector.shape_cast %12 : vector<1x1x2x2x128xf32> to vector<2x2x128xf32>
    %14 = vector.shape_cast %11 : vector<2x2x128xf32> to vector<1x1x2x2x128xf32>
    tpu.vector_store %arg9[%c0_11, %c0_12, %c0_13, %c0_14, %c0_15], %14 {strides = array<i32>} : memref<3x3x2x2x128xf32, #tpu.memory_space<vmem>>, vector<1x1x2x2x128xf32>,
    %c0_16 = arith.constant 0 : index
    %c1 = arith.constant 1 : index
    %c0_17 = arith.constant 0 : index
    %c0_18 = arith.constant 0 : index
    %c0_19 = arith.constant 0 : index
    %15 = vector.load %arg9[%c0_16, %c1, %c0_17, %c0_18, %c0_19] : memref<3x3x2x2x128xf32, #tpu.memory_space<vmem>>, vector<1x1x2x2x128xf32>
    %16 = vector.shape_cast %15 : vector<1x1x2x2x128xf32> to vector<2x2x128xf32>
    %17 = arith.addf %16, %3 : vector<2x2x128xf32>
    %c0_20 = arith.constant 0 : index
    %c1_21 = arith.constant 1 : index
    %c0_22 = arith.constant 0 : index
    %c0_23 = arith.constant 0 : index
    %c0_24 = arith.constant 0 : index
    %18 = vector.load %arg9[%c0_20, %c1_21, %c0_22, %c0_23, %c0_24] : memref<3x3x2x2x128xf32, #tpu.memory_space<vmem>>, vector<1x1x2x2x128xf32>
    %19 = vector.shape_cast %18 : vector<1x1x2x2x128xf32> to vector<2x2x128xf32>
    %20 = vector.shape_cast %17 : vector<2x2x128xf32> to vector<1x1x2x2x128xf32>
    tpu.vector_store %arg9[%c0_20, %c1_21, %c0_22, %c0_23, %c0_24], %20 {strides = array<i32>} : memref<3x3x2x2x128xf32, #tpu.memory_space<vmem>>, vector<1x1x2x2x128xf32>,
    %c0_25 = arith.constant 0 : index
    %c2 = arith.constant 2 : index
    %c0_26 = arith.constant 0 : index
    %c0_27 = arith.constant 0 : index
    %c0_28 = arith.constant 0 : index
    %21 = vector.load %arg9[%c0_25, %c2, %c0_26, %c0_27, %c0_28] : memref<3x3x2x2x128xf32, #tpu.memory_space<vmem>>, vector<1x1x2x2x128xf32>
    %22 = vector.shape_cast %21 : vector<1x1x2x2x128xf32> to vector<2x2x128xf32>
    %23 = arith.addf %22, %4 : vector<2x2x128xf32>
    %c0_29 = arith.constant 0 : index
    %c2_30 = arith.constant 2 : index
    %c0_31 = arith.constant 0 : index
    %c0_32 = arith.constant 0 : index
    %c0_33 = arith.constant 0 : index
    %24 = vector.load %arg9[%c0_29, %c2_30, %c0_31, %c0_32, %c0_33] : memref<3x3x2x2x128xf32, #tpu.memory_space<vmem>>, vector<1x1x2x2x128xf32>
    %25 = vector.shape_cast %24 : vector<1x1x2x2x128xf32> to vector<2x2x128xf32>
    %26 = vector.shape_cast %23 : vector<2x2x128xf32> to vector<1x1x2x2x128xf32>
    tpu.vector_store %arg9[%c0_29, %c2_30, %c0_31, %c0_32, %c0_33], %26 {strides = array<i32>} : memref<3x3x2x2x128xf32, #tpu.memory_space<vmem>>, vector<1x1x2x2x128xf32>,
    %c0_34 = arith.constant 0 : index
    %c0_35 = arith.constant 0 : index
    %c0_36 = arith.constant 0 : index
    %27 = vector.load %arg3[%c0_34, %c0_35, %c0_36] : memref<2x2x128xf32, #tpu.memory_space<vmem>>, vector<2x2x128xf32>
    %c0_37 = arith.constant 0 : index
    %c0_38 = arith.constant 0 : index
    %c0_39 = arith.constant 0 : index
    %28 = vector.load %arg6[%c0_37, %c0_38, %c0_39] : memref<2x2x128xf32, #tpu.memory_space<vmem>>, vector<2x2x128xf32>
    %cst_40 = arith.constant 1.000000e+02 : f32
    %29 = vector.broadcast %cst_40 : f32 to vector<2x2x128xf32>
    %30 = arith.mulf %29, %28 : vector<2x2x128xf32>
    %31 = arith.subf %27, %30 : vector<2x2x128xf32>
    %32 = arith.mulf %31, %31 : vector<2x2x128xf32>
    %c1_41 = arith.constant 1 : index
    %c0_42 = arith.constant 0 : index
    %c0_43 = arith.constant 0 : index
    %c0_44 = arith.constant 0 : index
    %c0_45 = arith.constant 0 : index
    %33 = vector.load %arg9[%c1_41, %c0_42, %c0_43, %c0_44, %c0_45] : memref<3x3x2x2x128xf32, #tpu.memory_space<vmem>>, vector<1x1x2x2x128xf32>
    %34 = vector.shape_cast %33 : vector<1x1x2x2x128xf32> to vector<2x2x128xf32>
    %35 = arith.addf %34, %32 : vector<2x2x128xf32>
    %c1_46 = arith.constant 1 : index
    %c0_47 = arith.constant 0 : index
    %c0_48 = arith.constant 0 : index
    %c0_49 = arith.constant 0 : index
    %c0_50 = arith.constant 0 : index
    %36 = vector.load %arg9[%c1_46, %c0_47, %c0_48, %c0_49, %c0_50] : memref<3x3x2x2x128xf32, #tpu.memory_space<vmem>>, vector<1x1x2x2x128xf32>
    %37 = vector.shape_cast %36 : vector<1x1x2x2x128xf32> to vector<2x2x128xf32>
    %38 = vector.shape_cast %35 : vector<2x2x128xf32> to vector<1x1x2x2x128xf32>
    tpu.vector_store %arg9[%c1_46, %c0_47, %c0_48, %c0_49, %c0_50], %38 {strides = array<i32>} : memref<3x3x2x2x128xf32, #tpu.memory_space<vmem>>, vector<1x1x2x2x128xf32>,
    %c1_51 = arith.constant 1 : index
    %c1_52 = arith.constant 1 : index
    %c0_53 = arith.constant 0 : index
    %c0_54 = arith.constant 0 : index
    %c0_55 = arith.constant 0 : index
    %39 = vector.load %arg9[%c1_51, %c1_52, %c0_53, %c0_54, %c0_55] : memref<3x3x2x2x128xf32, #tpu.memory_space<vmem>>, vector<1x1x2x2x128xf32>
    %40 = vector.shape_cast %39 : vector<1x1x2x2x128xf32> to vector<2x2x128xf32>
    %41 = arith.addf %40, %27 : vector<2x2x128xf32>
    %c1_56 = arith.constant 1 : index
    %c1_57 = arith.constant 1 : index
    %c0_58 = arith.constant 0 : index
    %c0_59 = arith.constant 0 : index
    %c0_60 = arith.constant 0 : index
    %42 = vector.load %arg9[%c1_56, %c1_57, %c0_58, %c0_59, %c0_60] : memref<3x3x2x2x128xf32, #tpu.memory_space<vmem>>, vector<1x1x2x2x128xf32>
    %43 = vector.shape_cast %42 : vector<1x1x2x2x128xf32> to vector<2x2x128xf32>
    %44 = vector.shape_cast %41 : vector<2x2x128xf32> to vector<1x1x2x2x128xf32>
    tpu.vector_store %arg9[%c1_56, %c1_57, %c0_58, %c0_59, %c0_60], %44 {strides = array<i32>} : memref<3x3x2x2x128xf32, #tpu.memory_space<vmem>>, vector<1x1x2x2x128xf32>,
    %c1_61 = arith.constant 1 : index
    %c2_62 = arith.constant 2 : index
    %c0_63 = arith.constant 0 : index
    %c0_64 = arith.constant 0 : index
    %c0_65 = arith.constant 0 : index
    %45 = vector.load %arg9[%c1_61, %c2_62, %c0_63, %c0_64, %c0_65] : memref<3x3x2x2x128xf32, #tpu.memory_space<vmem>>, vector<1x1x2x2x128xf32>
    %46 = vector.shape_cast %45 : vector<1x1x2x2x128xf32> to vector<2x2x128xf32>
    %47 = arith.addf %46, %28 : vector<2x2x128xf32>
    %c1_66 = arith.constant 1 : index
    %c2_67 = arith.constant 2 : index
    %c0_68 = arith.constant 0 : index
    %c0_69 = arith.constant 0 : index
    %c0_70 = arith.constant 0 : index
    %48 = vector.load %arg9[%c1_66, %c2_67, %c0_68, %c0_69, %c0_70] : memref<3x3x2x2x128xf32, #tpu.memory_space<vmem>>, vector<1x1x2x2x128xf32>
    %49 = vector.shape_cast %48 : vector<1x1x2x2x128xf32> to vector<2x2x128xf32>
    %50 = vector.shape_cast %47 : vector<2x2x128xf32> to vector<1x1x2x2x128xf32>
    tpu.vector_store %arg9[%c1_66, %c2_67, %c0_68, %c0_69, %c0_70], %50 {strides = array<i32>} : memref<3x3x2x2x128xf32, #tpu.memory_space<vmem>>, vector<1x1x2x2x128xf32>,
    %c0_71 = arith.constant 0 : index
    %c0_72 = arith.constant 0 : index
    %c0_73 = arith.constant 0 : index
    %51 = vector.load %arg4[%c0_71, %c0_72, %c0_73] : memref<2x2x128xf32, #tpu.memory_space<vmem>>, vector<2x2x128xf32>
    %c0_74 = arith.constant 0 : index
    %c0_75 = arith.constant 0 : index
    %c0_76 = arith.constant 0 : index
    %52 = vector.load %arg7[%c0_74, %c0_75, %c0_76] : memref<2x2x128xf32, #tpu.memory_space<vmem>>, vector<2x2x128xf32>
    %cst_77 = arith.constant 1.000000e+02 : f32
    %53 = vector.broadcast %cst_77 : f32 to vector<2x2x128xf32>
    %54 = arith.mulf %53, %52 : vector<2x2x128xf32>
    %55 = arith.subf %51, %54 : vector<2x2x128xf32>
    %56 = arith.mulf %55, %55 : vector<2x2x128xf32>
    %c2_78 = arith.constant 2 : index
    %c0_79 = arith.constant 0 : index
    %c0_80 = arith.constant 0 : index
    %c0_81 = arith.constant 0 : index
    %c0_82 = arith.constant 0 : index
    %57 = vector.load %arg9[%c2_78, %c0_79, %c0_80, %c0_81, %c0_82] : memref<3x3x2x2x128xf32, #tpu.memory_space<vmem>>, vector<1x1x2x2x128xf32>
    %58 = vector.shape_cast %57 : vector<1x1x2x2x128xf32> to vector<2x2x128xf32>
    %59 = arith.addf %58, %56 : vector<2x2x128xf32>
    %c2_83 = arith.constant 2 : index
    %c0_84 = arith.constant 0 : index
    %c0_85 = arith.constant 0 : index
    %c0_86 = arith.constant 0 : index
    %c0_87 = arith.constant 0 : index
    %60 = vector.load %arg9[%c2_83, %c0_84, %c0_85, %c0_86, %c0_87] : memref<3x3x2x2x128xf32, #tpu.memory_space<vmem>>, vector<1x1x2x2x128xf32>
    %61 = vector.shape_cast %60 : vector<1x1x2x2x128xf32> to vector<2x2x128xf32>
    %62 = vector.shape_cast %59 : vector<2x2x128xf32> to vector<1x1x2x2x128xf32>
    tpu.vector_store %arg9[%c2_83, %c0_84, %c0_85, %c0_86, %c0_87], %62 {strides = array<i32>} : memref<3x3x2x2x128xf32, #tpu.memory_space<vmem>>, vector<1x1x2x2x128xf32>,
    %c2_88 = arith.constant 2 : index
    %c1_89 = arith.constant 1 : index
    %c0_90 = arith.constant 0 : index
    %c0_91 = arith.constant 0 : index
    %c0_92 = arith.constant 0 : index
    %63 = vector.load %arg9[%c2_88, %c1_89, %c0_90, %c0_91, %c0_92] : memref<3x3x2x2x128xf32, #tpu.memory_space<vmem>>, vector<1x1x2x2x128xf32>
    %64 = vector.shape_cast %63 : vector<1x1x2x2x128xf32> to vector<2x2x128xf32>
    %65 = arith.addf %64, %51 : vector<2x2x128xf32>
    %c2_93 = arith.constant 2 : index
    %c1_94 = arith.constant 1 : index
    %c0_95 = arith.constant 0 : index
    %c0_96 = arith.constant 0 : index
    %c0_97 = arith.constant 0 : index
    %66 = vector.load %arg9[%c2_93, %c1_94, %c0_95, %c0_96, %c0_97] : memref<3x3x2x2x128xf32, #tpu.memory_space<vmem>>, vector<1x1x2x2x128xf32>
    %67 = vector.shape_cast %66 : vector<1x1x2x2x128xf32> to vector<2x2x128xf32>
    %68 = vector.shape_cast %65 : vector<2x2x128xf32> to vector<1x1x2x2x128xf32>
    tpu.vector_store %arg9[%c2_93, %c1_94, %c0_95, %c0_96, %c0_97], %68 {strides = array<i32>} : memref<3x3x2x2x128xf32, #tpu.memory_space<vmem>>, vector<1x1x2x2x128xf32>,
    %c2_98 = arith.constant 2 : index
    %c2_99 = arith.constant 2 : index
    %c0_100 = arith.constant 0 : index
    %c0_101 = arith.constant 0 : index
    %c0_102 = arith.constant 0 : index
    %69 = vector.load %arg9[%c2_98, %c2_99, %c0_100, %c0_101, %c0_102] : memref<3x3x2x2x128xf32, #tpu.memory_space<vmem>>, vector<1x1x2x2x128xf32>
    %70 = vector.shape_cast %69 : vector<1x1x2x2x128xf32> to vector<2x2x128xf32>
    %71 = arith.addf %70, %52 : vector<2x2x128xf32>
    %c2_103 = arith.constant 2 : index
    %c2_104 = arith.constant 2 : index
    %c0_105 = arith.constant 0 : index
    %c0_106 = arith.constant 0 : index
    %c0_107 = arith.constant 0 : index
    %72 = vector.load %arg9[%c2_103, %c2_104, %c0_105, %c0_106, %c0_107] : memref<3x3x2x2x128xf32, #tpu.memory_space<vmem>>, vector<1x1x2x2x128xf32>
    %73 = vector.shape_cast %72 : vector<1x1x2x2x128xf32> to vector<2x2x128xf32>
    %74 = vector.shape_cast %71 : vector<2x2x128xf32> to vector<1x1x2x2x128xf32>
    tpu.vector_store %arg9[%c2_103, %c2_104, %c0_105, %c0_106, %c0_107], %74 {strides = array<i32>} : memref<3x3x2x2x128xf32, #tpu.memory_space<vmem>>, vector<1x1x2x2x128xf32>,
    %c0_i32_108 = arith.constant 0 : i32
    %75 = arith.cmpi eq, %arg1, %c0_i32_108 : i32
    %76 = arith.extui %75 : i1 to i32
    %c0_i32_109 = arith.constant 0 : i32
    %77 = arith.cmpi ne, %76, %c0_i32_109 : i32
    scf.if %77 {
      %c0_110 = arith.constant 0 : index
      %c0_111 = arith.constant 0 : index
      %c0_112 = arith.constant 0 : index
      %c0_113 = arith.constant 0 : index
      %c0_114 = arith.constant 0 : index
      %78 = vector.load %arg9[%c0_110, %c0_111, %c0_112, %c0_113, %c0_114] : memref<3x3x2x2x128xf32, #tpu.memory_space<vmem>>, vector<1x1x2x2x128xf32>
      %79 = vector.shape_cast %78 : vector<1x1x2x2x128xf32> to vector<2x2x128xf32>
      %cst_115 = arith.constant dense<0.000000e+00> : vector<2x128xf32>
      %80 = vector.multi_reduction <add>, %79, %cst_115 [1] : vector<2x2x128xf32> to vector<2x128xf32>
      %cst_116 = arith.constant dense<0.000000e+00> : vector<2xf32>
      %81 = vector.multi_reduction <add>, %80, %cst_116 [1] : vector<2x128xf32> to vector<2xf32>
      %82 = vector.shape_cast %81 : vector<2xf32> to vector<2x1xf32>
      %c0_117 = arith.constant 0 : index
      %c0_118 = arith.constant 0 : index
      %c0_119 = arith.constant 0 : index
      %c0_120 = arith.constant 0 : index
      %83 = vector.load %arg8[%c0_117, %c0_118, %c0_119, %c0_120] : memref<1x3x2x3xf32, #tpu.memory_space<vmem>>, vector<1x1x2x1xf32>
      %84 = vector.shape_cast %83 : vector<1x1x2x1xf32> to vector<2x1xf32>
      %85 = vector.shape_cast %82 : vector<2x1xf32> to vector<1x1x2x1xf32>
      tpu.vector_store %arg8[%c0_117, %c0_118, %c0_119, %c0_120], %85 {strides = array<i32>} : memref<1x3x2x3xf32, #tpu.memory_space<vmem>>, vector<1x1x2x1xf32>,
      %c0_121 = arith.constant 0 : index
      %c1_122 = arith.constant 1 : index
      %c0_123 = arith.constant 0 : index
      %c0_124 = arith.constant 0 : index
      %c0_125 = arith.constant 0 : index
      %86 = vector.load %arg9[%c0_121, %c1_122, %c0_123, %c0_124, %c0_125] : memref<3x3x2x2x128xf32, #tpu.memory_space<vmem>>, vector<1x1x2x2x128xf32>
      %87 = vector.shape_cast %86 : vector<1x1x2x2x128xf32> to vector<2x2x128xf32>
      %cst_126 = arith.constant dense<0.000000e+00> : vector<2x128xf32>
      %88 = vector.multi_reduction <add>, %87, %cst_126 [1] : vector<2x2x128xf32> to vector<2x128xf32>
      %cst_127 = arith.constant dense<0.000000e+00> : vector<2xf32>
      %89 = vector.multi_reduction <add>, %88, %cst_127 [1] : vector<2x128xf32> to vector<2xf32>
      %90 = vector.shape_cast %89 : vector<2xf32> to vector<2x1xf32>
      %c0_128 = arith.constant 0 : index
      %c0_129 = arith.constant 0 : index
      %c0_130 = arith.constant 0 : index
      %c1_131 = arith.constant 1 : index
      %91 = vector.load %arg8[%c0_128, %c0_129, %c0_130, %c1_131] : memref<1x3x2x3xf32, #tpu.memory_space<vmem>>, vector<1x1x2x1xf32>
      %92 = vector.shape_cast %91 : vector<1x1x2x1xf32> to vector<2x1xf32>
      %93 = vector.shape_cast %90 : vector<2x1xf32> to vector<1x1x2x1xf32>
      tpu.vector_store %arg8[%c0_128, %c0_129, %c0_130, %c1_131], %93 {strides = array<i32>} : memref<1x3x2x3xf32, #tpu.memory_space<vmem>>, vector<1x1x2x1xf32>,
      %c0_132 = arith.constant 0 : index
      %c2_133 = arith.constant 2 : index
      %c0_134 = arith.constant 0 : index
      %c0_135 = arith.constant 0 : index
      %c0_136 = arith.constant 0 : index
      %94 = vector.load %arg9[%c0_132, %c2_133, %c0_134, %c0_135, %c0_136] : memref<3x3x2x2x128xf32, #tpu.memory_space<vmem>>, vector<1x1x2x2x128xf32>
      %95 = vector.shape_cast %94 : vector<1x1x2x2x128xf32> to vector<2x2x128xf32>
      %cst_137 = arith.constant dense<0.000000e+00> : vector<2x128xf32>
      %96 = vector.multi_reduction <add>, %95, %cst_137 [1] : vector<2x2x128xf32> to vector<2x128xf32>
      %cst_138 = arith.constant dense<0.000000e+00> : vector<2xf32>
      %97 = vector.multi_reduction <add>, %96, %cst_138 [1] : vector<2x128xf32> to vector<2xf32>
      %98 = vector.shape_cast %97 : vector<2xf32> to vector<2x1xf32>
      %c0_139 = arith.constant 0 : index
      %c0_140 = arith.constant 0 : index
      %c0_141 = arith.constant 0 : index
      %c2_142 = arith.constant 2 : index
      %99 = vector.load %arg8[%c0_139, %c0_140, %c0_141, %c2_142] : memref<1x3x2x3xf32, #tpu.memory_space<vmem>>, vector<1x1x2x1xf32>
      %100 = vector.shape_cast %99 : vector<1x1x2x1xf32> to vector<2x1xf32>
      %101 = vector.shape_cast %98 : vector<2x1xf32> to vector<1x1x2x1xf32>
      tpu.vector_store %arg8[%c0_139, %c0_140, %c0_141, %c2_142], %101 {strides = array<i32>} : memref<1x3x2x3xf32, #tpu.memory_space<vmem>>, vector<1x1x2x1xf32>,
      %c1_143 = arith.constant 1 : index
      %c0_144 = arith.constant 0 : index
      %c0_145 = arith.constant 0 : index
      %c0_146 = arith.constant 0 : index
      %c0_147 = arith.constant 0 : index
      %102 = vector.load %arg9[%c1_143, %c0_144, %c0_145, %c0_146, %c0_147] : memref<3x3x2x2x128xf32, #tpu.memory_space<vmem>>, vector<1x1x2x2x128xf32>
      %103 = vector.shape_cast %102 : vector<1x1x2x2x128xf32> to vector<2x2x128xf32>
      %cst_148 = arith.constant dense<0.000000e+00> : vector<2x128xf32>
      %104 = vector.multi_reduction <add>, %103, %cst_148 [1] : vector<2x2x128xf32> to vector<2x128xf32>
      %cst_149 = arith.constant dense<0.000000e+00> : vector<2xf32>
      %105 = vector.multi_reduction <add>, %104, %cst_149 [1] : vector<2x128xf32> to vector<2xf32>
      %106 = vector.shape_cast %105 : vector<2xf32> to vector<2x1xf32>
      %c0_150 = arith.constant 0 : index
      %c1_151 = arith.constant 1 : index
      %c0_152 = arith.constant 0 : index
      %c0_153 = arith.constant 0 : index
      %107 = vector.load %arg8[%c0_150, %c1_151, %c0_152, %c0_153] : memref<1x3x2x3xf32, #tpu.memory_space<vmem>>, vector<1x1x2x1xf32>
      %108 = vector.shape_cast %107 : vector<1x1x2x1xf32> to vector<2x1xf32>
      %109 = vector.shape_cast %106 : vector<2x1xf32> to vector<1x1x2x1xf32>
      tpu.vector_store %arg8[%c0_150, %c1_151, %c0_152, %c0_153], %109 {strides = array<i32>} : memref<1x3x2x3xf32, #tpu.memory_space<vmem>>, vector<1x1x2x1xf32>,
      %c1_154 = arith.constant 1 : index
      %c1_155 = arith.constant 1 : index
      %c0_156 = arith.constant 0 : index
      %c0_157 = arith.constant 0 : index
      %c0_158 = arith.constant 0 : index
      %110 = vector.load %arg9[%c1_154, %c1_155, %c0_156, %c0_157, %c0_158] : memref<3x3x2x2x128xf32, #tpu.memory_space<vmem>>, vector<1x1x2x2x128xf32>
      %111 = vector.shape_cast %110 : vector<1x1x2x2x128xf32> to vector<2x2x128xf32>
      %cst_159 = arith.constant dense<0.000000e+00> : vector<2x128xf32>
      %112 = vector.multi_reduction <add>, %111, %cst_159 [1] : vector<2x2x128xf32> to vector<2x128xf32>
      %cst_160 = arith.constant dense<0.000000e+00> : vector<2xf32>
      %113 = vector.multi_reduction <add>, %112, %cst_160 [1] : vector<2x128xf32> to vector<2xf32>
      %114 = vector.shape_cast %113 : vector<2xf32> to vector<2x1xf32>
      %c0_161 = arith.constant 0 : index
      %c1_162 = arith.constant 1 : index
      %c0_163 = arith.constant 0 : index
      %c1_164 = arith.constant 1 : index
      %115 = vector.load %arg8[%c0_161, %c1_162, %c0_163, %c1_164] : memref<1x3x2x3xf32, #tpu.memory_space<vmem>>, vector<1x1x2x1xf32>
      %116 = vector.shape_cast %115 : vector<1x1x2x1xf32> to vector<2x1xf32>
      %117 = vector.shape_cast %114 : vector<2x1xf32> to vector<1x1x2x1xf32>
      tpu.vector_store %arg8[%c0_161, %c1_162, %c0_163, %c1_164], %117 {strides = array<i32>} : memref<1x3x2x3xf32, #tpu.memory_space<vmem>>, vector<1x1x2x1xf32>,
      %c1_165 = arith.constant 1 : index
      %c2_166 = arith.constant 2 : index
      %c0_167 = arith.constant 0 : index
      %c0_168 = arith.constant 0 : index
      %c0_169 = arith.constant 0 : index
      %118 = vector.load %arg9[%c1_165, %c2_166, %c0_167, %c0_168, %c0_169] : memref<3x3x2x2x128xf32, #tpu.memory_space<vmem>>, vector<1x1x2x2x128xf32>
      %119 = vector.shape_cast %118 : vector<1x1x2x2x128xf32> to vector<2x2x128xf32>
      %cst_170 = arith.constant dense<0.000000e+00> : vector<2x128xf32>
      %120 = vector.multi_reduction <add>, %119, %cst_170 [1] : vector<2x2x128xf32> to vector<2x128xf32>
      %cst_171 = arith.constant dense<0.000000e+00> : vector<2xf32>
      %121 = vector.multi_reduction <add>, %120, %cst_171 [1] : vector<2x128xf32> to vector<2xf32>
      %122 = vector.shape_cast %121 : vector<2xf32> to vector<2x1xf32>
      %c0_172 = arith.constant 0 : index
      %c1_173 = arith.constant 1 : index
      %c0_174 = arith.constant 0 : index
      %c2_175 = arith.constant 2 : index
      %123 = vector.load %arg8[%c0_172, %c1_173, %c0_174, %c2_175] : memref<1x3x2x3xf32, #tpu.memory_space<vmem>>, vector<1x1x2x1xf32>
      %124 = vector.shape_cast %123 : vector<1x1x2x1xf32> to vector<2x1xf32>
      %125 = vector.shape_cast %122 : vector<2x1xf32> to vector<1x1x2x1xf32>
      tpu.vector_store %arg8[%c0_172, %c1_173, %c0_174, %c2_175], %125 {strides = array<i32>} : memref<1x3x2x3xf32, #tpu.memory_space<vmem>>, vector<1x1x2x1xf32>,
      %c2_176 = arith.constant 2 : index
      %c0_177 = arith.constant 0 : index
      %c0_178 = arith.constant 0 : index
      %c0_179 = arith.constant 0 : index
      %c0_180 = arith.constant 0 : index
      %126 = vector.load %arg9[%c2_176, %c0_177, %c0_178, %c0_179, %c0_180] : memref<3x3x2x2x128xf32, #tpu.memory_space<vmem>>, vector<1x1x2x2x128xf32>
      %127 = vector.shape_cast %126 : vector<1x1x2x2x128xf32> to vector<2x2x128xf32>
      %cst_181 = arith.constant dense<0.000000e+00> : vector<2x128xf32>
      %128 = vector.multi_reduction <add>, %127, %cst_181 [1] : vector<2x2x128xf32> to vector<2x128xf32>
      %cst_182 = arith.constant dense<0.000000e+00> : vector<2xf32>
      %129 = vector.multi_reduction <add>, %128, %cst_182 [1] : vector<2x128xf32> to vector<2xf32>
      %130 = vector.shape_cast %129 : vector<2xf32> to vector<2x1xf32>
      %c0_183 = arith.constant 0 : index
      %c2_184 = arith.constant 2 : index
      %c0_185 = arith.constant 0 : index
      %c0_186 = arith.constant 0 : index
      %131 = vector.load %arg8[%c0_183, %c2_184, %c0_185, %c0_186] : memref<1x3x2x3xf32, #tpu.memory_space<vmem>>, vector<1x1x2x1xf32>
      %132 = vector.shape_cast %131 : vector<1x1x2x1xf32> to vector<2x1xf32>
      %133 = vector.shape_cast %130 : vector<2x1xf32> to vector<1x1x2x1xf32>
      tpu.vector_store %arg8[%c0_183, %c2_184, %c0_185, %c0_186], %133 {strides = array<i32>} : memref<1x3x2x3xf32, #tpu.memory_space<vmem>>, vector<1x1x2x1xf32>,
      %c2_187 = arith.constant 2 : index
      %c1_188 = arith.constant 1 : index
      %c0_189 = arith.constant 0 : index
      %c0_190 = arith.constant 0 : index
      %c0_191 = arith.constant 0 : index
      %134 = vector.load %arg9[%c2_187, %c1_188, %c0_189, %c0_190, %c0_191] : memref<3x3x2x2x128xf32, #tpu.memory_space<vmem>>, vector<1x1x2x2x128xf32>
      %135 = vector.shape_cast %134 : vector<1x1x2x2x128xf32> to vector<2x2x128xf32>
      %cst_192 = arith.constant dense<0.000000e+00> : vector<2x128xf32>
      %136 = vector.multi_reduction <add>, %135, %cst_192 [1] : vector<2x2x128xf32> to vector<2x128xf32>
      %cst_193 = arith.constant dense<0.000000e+00> : vector<2xf32>
      %137 = vector.multi_reduction <add>, %136, %cst_193 [1] : vector<2x128xf32> to vector<2xf32>
      %138 = vector.shape_cast %137 : vector<2xf32> to vector<2x1xf32>
      %c0_194 = arith.constant 0 : index
      %c2_195 = arith.constant 2 : index
      %c0_196 = arith.constant 0 : index
      %c1_197 = arith.constant 1 : index
      %139 = vector.load %arg8[%c0_194, %c2_195, %c0_196, %c1_197] : memref<1x3x2x3xf32, #tpu.memory_space<vmem>>, vector<1x1x2x1xf32>
      %140 = vector.shape_cast %139 : vector<1x1x2x1xf32> to vector<2x1xf32>
      %141 = vector.shape_cast %138 : vector<2x1xf32> to vector<1x1x2x1xf32>
      tpu.vector_store %arg8[%c0_194, %c2_195, %c0_196, %c1_197], %141 {strides = array<i32>} : memref<1x3x2x3xf32, #tpu.memory_space<vmem>>, vector<1x1x2x1xf32>,
      %c2_198 = arith.constant 2 : index
      %c2_199 = arith.constant 2 : index
      %c0_200 = arith.constant 0 : index
      %c0_201 = arith.constant 0 : index
      %c0_202 = arith.constant 0 : index
      %142 = vector.load %arg9[%c2_198, %c2_199, %c0_200, %c0_201, %c0_202] : memref<3x3x2x2x128xf32, #tpu.memory_space<vmem>>, vector<1x1x2x2x128xf32>
      %143 = vector.shape_cast %142 : vector<1x1x2x2x128xf32> to vector<2x2x128xf32>
      %cst_203 = arith.constant dense<0.000000e+00> : vector<2x128xf32>
      %144 = vector.multi_reduction <add>, %143, %cst_203 [1] : vector<2x2x128xf32> to vector<2x128xf32>
      %cst_204 = arith.constant dense<0.000000e+00> : vector<2xf32>
      %145 = vector.multi_reduction <add>, %144, %cst_204 [1] : vector<2x128xf32> to vector<2xf32>
      %146 = vector.shape_cast %145 : vector<2xf32> to vector<2x1xf32>
      %c0_205 = arith.constant 0 : index
      %c2_206 = arith.constant 2 : index
      %c0_207 = arith.constant 0 : index
      %c2_208 = arith.constant 2 : index
      %147 = vector.load %arg8[%c0_205, %c2_206, %c0_207, %c2_208] : memref<1x3x2x3xf32, #tpu.memory_space<vmem>>, vector<1x1x2x1xf32>
      %148 = vector.shape_cast %147 : vector<1x1x2x1xf32> to vector<2x1xf32>
      %149 = vector.shape_cast %146 : vector<2x1xf32> to vector<1x1x2x1xf32>
      tpu.vector_store %arg8[%c0_205, %c2_206, %c0_207, %c2_208], %149 {strides = array<i32>} : memref<1x3x2x3xf32, #tpu.memory_space<vmem>>, vector<1x1x2x1xf32>,
    } else {
    }
    return
  }
  func.func @transform_0(%arg0: i32, %arg1: i32) -> (i32, i32, i32) {
    %c1_i32 = arith.constant 1 : i32
    %0 = arith.muli %arg0, %c1_i32 : i32
    %1 = arith.addi %0, %arg1 : i32
    %c0_i32 = arith.constant 0 : i32
    %c0_i32_0 = arith.constant 0 : i32
    %c0_i32_1 = arith.constant 0 : i32
    return %c0_i32, %1, %c0_i32_0 : i32, i32, i32
  }
  func.func @transform_1(%arg0: i32, %arg1: i32) -> (i32, i32, i32) {
    %c1_i32 = arith.constant 1 : i32
    %0 = arith.muli %arg0, %c1_i32 : i32
    %1 = arith.addi %0, %arg1 : i32
    %c0_i32 = arith.constant 0 : i32
    %c0_i32_0 = arith.constant 0 : i32
    %c0_i32_1 = arith.constant 0 : i32
    return %c0_i32, %1, %c0_i32_0 : i32, i32, i32
  }
  func.func @transform_2(%arg0: i32, %arg1: i32) -> (i32, i32, i32) {
    %c1_i32 = arith.constant 1 : i32
    %0 = arith.muli %arg0, %c1_i32 : i32
    %1 = arith.addi %0, %arg1 : i32
    %c0_i32 = arith.constant 0 : i32
    %c0_i32_0 = arith.constant 0 : i32
    %c0_i32_1 = arith.constant 0 : i32
    return %c0_i32, %1, %c0_i32_0 : i32, i32, i32
  }
  func.func @transform_3(%arg0: i32, %arg1: i32) -> (i32, i32, i32) {
    %c1_i32 = arith.constant 1 : i32
    %0 = arith.muli %arg0, %c1_i32 : i32
    %1 = arith.addi %0, %arg1 : i32
    %c0_i32 = arith.constant 0 : i32
    %c0_i32_0 = arith.constant 0 : i32
    %c0_i32_1 = arith.constant 0 : i32
    return %c0_i32, %1, %c0_i32_0 : i32, i32, i32
  }
  func.func @transform_4(%arg0: i32, %arg1: i32) -> (i32, i32, i32) {
    %c1_i32 = arith.constant 1 : i32
    %0 = arith.muli %arg0, %c1_i32 : i32
    %1 = arith.addi %0, %arg1 : i32
    %c0_i32 = arith.constant 0 : i32
    %c0_i32_0 = arith.constant 0 : i32
    %c0_i32_1 = arith.constant 0 : i32
    return %c0_i32, %1, %c0_i32_0 : i32, i32, i32
  }
  func.func @transform_5(%arg0: i32, %arg1: i32) -> (i32, i32, i32) {
    %c1_i32 = arith.constant 1 : i32
    %0 = arith.muli %arg0, %c1_i32 : i32
    %1 = arith.addi %0, %arg1 : i32
    %c0_i32 = arith.constant 0 : i32
    %c0_i32_0 = arith.constant 0 : i32
    %c0_i32_1 = arith.constant 0 : i32
    return %c0_i32, %1, %c0_i32_0 : i32, i32, i32
  }
  func.func @transform_6(%arg0: i32, %arg1: i32) -> (i32, i32, i32, i32) {
    %c0_i32 = arith.constant 0 : i32
    %c0_i32_0 = arith.constant 0 : i32
    %c0_i32_1 = arith.constant 0 : i32
    %c0_i32_2 = arith.constant 0 : i32
    return %arg0, %c0_i32, %c0_i32_0, %c0_i32_1 : i32, i32, i32, i32
  }
}

</mosaic_0001>

<llo_original>
// kernel: tpu_custom_call.1
$region0: #{tpu_custom_call.1}
  #allocation0 [shape = 'u32[]', space=smem, size = 0x4, offset = 0x4, fixed_abs, tag = 'smem constant byte address 0x4 - core index']
  #allocation1 [shape = 'u32[144,128]{1,0:T(1,128)}', space=vmem, size = 0x12000, scoped, tag = 'internal scratch']
  #allocation2 [shape = 'f32[3,3,2,2,128]{4,3,2,1,0:T(2,128)}', space=vmem, size = 0x4800, scoped, tag = 'scratch operand']
  %s0 = inlined_call_operand.hbm [shape: f32[2,2,128], index: 0, kind: input, shape index: {}]
  %s1 = inlined_call_operand.hbm [shape: f32[2,2,128], index: 1, kind: input, shape index: {}]
  %s2 = inlined_call_operand.vmem [shape: f32[2,2,128], index: 2, kind: input, shape index: {}]
  %s3 = inlined_call_operand.vmem [shape: f32[2,2,128], index: 3, kind: input, shape index: {}]
  %s4 = inlined_call_operand.vmem [shape: f32[2,2,128], index: 4, kind: input, shape index: {}]
  %s5 = inlined_call_operand.vmem [shape: f32[2,2,128], index: 5, kind: input, shape index: {}]
  %s6 = inlined_call_operand.hbm [shape: f32[1,3,2,3], index: 6, kind: output, shape index: {}]
  %s7 = sld [smem:[#allocation0]]
  $region50: #{tpu_custom_call.1} parent=0
    _
  %s9 = ssub.s32 1, %s7
  %s10 = scalar_select 0, %s9, %s7
  $region1: #{tpu_custom_call.1} parent=0
    #allocation3 [shape = 'u8[2048]{0}', space=vmem, size = 0x800, scoped, tag = 'input window, operand 0, single buffered']
    #allocation4 [shape = 's32[1]{0}', space=sflag, size = 0x4, scoped, tag = 'scoped memory for tpu_custom_call.1']
    #allocation5 [shape = 's32[1]{0}', space=sflag, size = 0x4, scoped, tag = 'scoped memory for tpu_custom_call.1']
    #allocation6 [shape = 'u8[2048]{0}', space=vmem, size = 0x800, scoped, tag = 'input window, operand 1, single buffered']
    #allocation7 [shape = 's32[1]{0}', space=sflag, size = 0x4, scoped, tag = 'scoped memory for tpu_custom_call.1']
    #allocation8 [shape = 'u8[3072]{0}', space=vmem, size = 0xc00, scoped, tag = 'output window, operand 0, single buffered']
    %11 = vsyncpa [#allocation4], 0
    %12 = vsyncpa [#allocation7], 0
    %13 = vsyncpa [#allocation5], 0
    // Predicated region
    $region2: #{tpu_custom_call.1} parent=1 // pred_check
      _
    $region3: #{tpu_custom_call.1} parent=1 // pred_check_branch
      %15 = sbr.rel (0) target = $region5
    $region4: #{tpu_custom_call.1} parent=1 // pred_region
      %s16 = sadd.s32 0, 0
      %s18 = ssub.s32 64, 64
      %19 = vsyncadd [#allocation4], %s18
      %s20 = smul.addr %s16, 32
      %s21 = scalar_lea.hbm %s0, %s20
      %s22 = sshll.u32 [#allocation3], 4
      %s23 = int_to_ptr.vmem [resolvable:$true] %s22
      %28 = dma.hbm_to_vmem [thread:$0]  %s21, 64, %s23, [#allocation4], 32, 32, 2
    $region5: #{tpu_custom_call.1} parent=1 // pred_fallthru
      _
    // Predicated region
    $region6: #{tpu_custom_call.1} parent=1 // pred_check
      _
    $region7: #{tpu_custom_call.1} parent=1 // pred_check_branch
      %30 = sbr.rel (0) target = $region9
    $region8: #{tpu_custom_call.1} parent=1 // pred_region
      %s31 = sadd.s32 0, 0
      %s33 = ssub.s32 64, 64
      %34 = vsyncadd [#allocation7], %s33
      %s35 = smul.addr %s31, 32
      %s36 = scalar_lea.hbm %s1, %s35
      %s37 = sshll.u32 [#allocation6], 4
      %s38 = int_to_ptr.vmem [resolvable:$true] %s37
      %43 = dma.hbm_to_vmem [thread:$0]  %s36, 64, %s38, [#allocation7], 32, 32, 2
    $region9: #{tpu_custom_call.1} parent=1 // pred_fallthru
      _
    // Predicated region
    $region10: #{tpu_custom_call.1} parent=1 // pred_check
      _
    $region11: #{tpu_custom_call.1} parent=1 // pred_check_branch
      %45 = sbr.rel (0) target = $region13
    $region12: #{tpu_custom_call.1} parent=1 // pred_region
      %s46 = sadd.s32 0, 0
      %p47 = scmp.lt.s32.totalorder %s46, 0
      %s48 = scalar_select %p47, %s46, 0
      %s49 = smul.addr %s48, 2
      %s50 = scalar_lea.vmem %s2, %s49
      %s51 = sadd.s32 0, 0
    $region13: #{tpu_custom_call.1} parent=1 // pred_fallthru
      _
    // Predicated region
    $region14: #{tpu_custom_call.1} parent=1 // pred_check
      _
    $region15: #{tpu_custom_call.1} parent=1 // pred_check_branch
      %53 = sbr.rel (0) target = $region17
    $region16: #{tpu_custom_call.1} parent=1 // pred_region
      %s54 = sadd.s32 0, 0
      %p55 = scmp.lt.s32.totalorder %s54, 0
      %s56 = scalar_select %p55, %s54, 0
      %s57 = smul.addr %s56, 2
      %s58 = scalar_lea.vmem %s3, %s57
      %s59 = sadd.s32 0, 0
    $region17: #{tpu_custom_call.1} parent=1 // pred_fallthru
      _
    // Predicated region
    $region18: #{tpu_custom_call.1} parent=1 // pred_check
      _
    $region19: #{tpu_custom_call.1} parent=1 // pred_check_branch
      %61 = sbr.rel (0) target = $region21
    $region20: #{tpu_custom_call.1} parent=1 // pred_region
      %s62 = sadd.s32 0, 0
      %p63 = scmp.lt.s32.totalorder %s62, 0
      %s64 = scalar_select %p63, %s62, 0
      %s65 = smul.addr %s64, 2
      %s66 = scalar_lea.vmem %s4, %s65
      %s67 = sadd.s32 0, 0
    $region21: #{tpu_custom_call.1} parent=1 // pred_fallthru
      _
    // Predicated region
    $region22: #{tpu_custom_call.1} parent=1 // pred_check
      _
    $region23: #{tpu_custom_call.1} parent=1 // pred_check_branch
      %69 = sbr.rel (0) target = $region25
    $region24: #{tpu_custom_call.1} parent=1 // pred_region
      %s70 = sadd.s32 0, 0
      %p71 = scmp.lt.s32.totalorder %s70, 0
      %s72 = scalar_select %p71, %s70, 0
      %s73 = smul.addr %s72, 2
      %s74 = scalar_lea.vmem %s5, %s73
      %s75 = sadd.s32 0, 0
    $region25: #{tpu_custom_call.1} parent=1 // pred_fallthru
      _
    // Predicated region
    $region26: #{tpu_custom_call.1} parent=1 // pred_check
      _
    $region27: #{tpu_custom_call.1} parent=1 // pred_check_branch
      %77 = sbr.rel (0) target = $region29
    $region28: #{tpu_custom_call.1} parent=1 // pred_region
      %78 = dma.done [#allocation4], 64
    $region29: #{tpu_custom_call.1} parent=1 // pred_fallthru
      _
    // Predicated region
    $region30: #{tpu_custom_call.1} parent=1 // pred_check
      _
    $region31: #{tpu_custom_call.1} parent=1 // pred_check_branch
      %80 = sbr.rel (0) target = $region33
    $region32: #{tpu_custom_call.1} parent=1 // pred_region
      %81 = dma.done [#allocation7], 64
    $region33: #{tpu_custom_call.1} parent=1 // pred_fallthru
      _
    %s82 = sadd.s32 0, 0
    %p83 = scmp.lt.s32.totalorder %s82, 0
    %s84 = scalar_select %p83, %s82, 0
    %s85 = smul.addr %s84, 2
    %s86 = scalar_lea.vmem %s2, %s85
    %s87 = sadd.s32 0, 0
    %p88 = scmp.lt.s32.totalorder %s87, 0
    %s89 = scalar_select %p88, %s87, 0
    %s90 = smul.addr %s89, 2
    %s91 = scalar_lea.vmem %s3, %s90
    %s92 = sadd.s32 0, 0
    %p93 = scmp.lt.s32.totalorder %s92, 0
    %s94 = scalar_select %p93, %s92, 0
    %s95 = smul.addr %s94, 2
    %s96 = scalar_lea.vmem %s4, %s95
    %s97 = sadd.s32 0, 0
    %p98 = scmp.lt.s32.totalorder %s97, 0
    %s99 = scalar_select %p98, %s97, 0
    %s100 = smul.addr %s99, 2
    %s101 = scalar_lea.vmem %s5, %s100
    %s102 = sadd.s32 0, 0
    %s103 = sadd.s32 0, 0
    %s104 = sadd.s32 0, 0
    %p105 = scmp.lt.s32.totalorder %s104, 0
    %s106 = scalar_select %p105, %s104, 0
    %s107 = smul.addr %s106, 2
    %s108 = scalar_lea.vmem %s2, %s107
    %s109 = sadd.s32 0, 0
    %s110 = sadd.s32 0, 0
    %p111 = scmp.lt.s32.totalorder %s110, 0
    %s112 = scalar_select %p111, %s110, 0
    %s113 = smul.addr %s112, 2
    %s114 = scalar_lea.vmem %s3, %s113
    %s115 = sadd.s32 0, 0
    %s116 = sadd.s32 0, 0
    %p117 = scmp.lt.s32.totalorder %s116, 0
    %s118 = scalar_select %p117, %s116, 0
    %s119 = smul.addr %s118, 2
    %s120 = scalar_lea.vmem %s4, %s119
    %s121 = sadd.s32 0, 0
    %s122 = sadd.s32 0, 0
    %p123 = scmp.lt.s32.totalorder %s122, 0
    %s124 = scalar_select %p123, %s122, 0
    %s125 = smul.addr %s124, 2
    %s126 = scalar_lea.vmem %s5, %s125
    %s127 = sadd.s32 0, 0
    %p128 = scmp.eq.s32.totalorder 0, 0
    // Predicated region
    $region34: #{tpu_custom_call.1} parent=1 // pred_check
      %p129 = pneg %p128
    $region35: #{tpu_custom_call.1} parent=1 // pred_check_branch
      %131 = sbr.rel (%p129) target = $region37
    $region36: #{tpu_custom_call.1} parent=1 // pred_region
      %132 = vst [vmem:[#allocation2] sm:$0x3] 0.0
      %133 = vst [vmem:[#allocation2 + $0x2] sm:$0x3] 0.0
      %134 = vst [vmem:[#allocation2 + $0x4] sm:$0x3] 0.0
      %135 = vst [vmem:[#allocation2 + $0x6] sm:$0x3] 0.0
      %136 = vst [vmem:[#allocation2 + $0x8] sm:$0x3] 0.0
      %137 = vst [vmem:[#allocation2 + $0xa] sm:$0x3] 0.0
      %138 = vst [vmem:[#allocation2 + $0xc] sm:$0x3] 0.0
      %139 = vst [vmem:[#allocation2 + $0xe] sm:$0x3] 0.0
      %140 = vst [vmem:[#allocation2 + $0x10] sm:$0x3] 0.0
      %141 = vst [vmem:[#allocation2 + $0x12] sm:$0x3] 0.0
      %142 = vst [vmem:[#allocation2 + $0x14] sm:$0x3] 0.0
      %143 = vst [vmem:[#allocation2 + $0x16] sm:$0x3] 0.0
      %144 = vst [vmem:[#allocation2 + $0x18] sm:$0x3] 0.0
      %145 = vst [vmem:[#allocation2 + $0x1a] sm:$0x3] 0.0
      %146 = vst [vmem:[#allocation2 + $0x1c] sm:$0x3] 0.0
      %147 = vst [vmem:[#allocation2 + $0x1e] sm:$0x3] 0.0
      %148 = vst [vmem:[#allocation2 + $0x20] sm:$0x3] 0.0
      %149 = vst [vmem:[#allocation2 + $0x22] sm:$0x3] 0.0
    $region37: #{tpu_custom_call.1} parent=1 // pred_fallthru
      _
    %v150 = vld [vmem:[#allocation3] sm:$0x3]
    %v151 = vld [vmem:[#allocation3 + $0x2] sm:$0x3]
    %v152 = vld [vmem:[%s114] sm:$0x3]
    %v153 = vld [vmem:[%s114 + $0x2] sm:$0x3]
    %v154 = vmul.f32 %v152, 100.0
    %v155 = vmul.f32 %v153, 100.0
    %v156 = vsub.f32 %v150, %v154
    %v157 = vsub.f32 %v151, %v155
    %v158 = vmul.f32 %v156, %v156
    %v159 = vmul.f32 %v157, %v157
    %v160 = vld [vmem:[#allocation2] sm:$0x3]
    %v161 = vld [vmem:[#allocation2 + $0x2] sm:$0x3]
    %v162 = vadd.f32 %v160, %v158
    %v163 = vadd.f32 %v161, %v159
    %164 = vst [vmem:[#allocation2] sm:$0x3] %v162
    %165 = vst [vmem:[#allocation2 + $0x2] sm:$0x3] %v163
    %s166 = scalar_lea.vmem [#allocation2], 4
    %v167 = vld [vmem:[%s166] sm:$0x3]
    %v168 = vld [vmem:[%s166 + $0x2] sm:$0x3]
    %v169 = vadd.f32 %v167, %v150
    %v170 = vadd.f32 %v168, %v151
    %171 = vst [vmem:[%s166] sm:$0x3] %v169
    %172 = vst [vmem:[%s166 + $0x2] sm:$0x3] %v170
    %s173 = scalar_lea.vmem [#allocation2], 8
    %v174 = vld [vmem:[%s173] sm:$0x3]
    %v175 = vld [vmem:[%s173 + $0x2] sm:$0x3]
    %v176 = vadd.f32 %v174, %v152
    %v177 = vadd.f32 %v175, %v153
    %178 = vst [vmem:[%s173] sm:$0x3] %v176
    %179 = vst [vmem:[%s173 + $0x2] sm:$0x3] %v177
    %v180 = vld [vmem:[#allocation6] sm:$0x3]
    %v181 = vld [vmem:[#allocation6 + $0x2] sm:$0x3]
    %v182 = vld [vmem:[%s120] sm:$0x3]
    %v183 = vld [vmem:[%s120 + $0x2] sm:$0x3]
    %v184 = vmul.f32 %v182, 100.0
    %v185 = vmul.f32 %v183, 100.0
    %v186 = vsub.f32 %v180, %v184
    %v187 = vsub.f32 %v181, %v185
    %v188 = vmul.f32 %v186, %v186
    %v189 = vmul.f32 %v187, %v187
    %s190 = scalar_lea.vmem [#allocation2], 12
    %v191 = vld [vmem:[%s190] sm:$0x3]
    %v192 = vld [vmem:[%s190 + $0x2] sm:$0x3]
    %v193 = vadd.f32 %v191, %v188
    %v194 = vadd.f32 %v192, %v189
    %195 = vst [vmem:[%s190] sm:$0x3] %v193
    %196 = vst [vmem:[%s190 + $0x2] sm:$0x3] %v194
    %s197 = scalar_lea.vmem [#allocation2], 16
    %v198 = vld [vmem:[%s197] sm:$0x3]
    %v199 = vld [vmem:[%s197 + $0x2] sm:$0x3]
    %v200 = vadd.f32 %v198, %v180
    %v201 = vadd.f32 %v199, %v181
    %202 = vst [vmem:[%s197] sm:$0x3] %v200
    %203 = vst [vmem:[%s197 + $0x2] sm:$0x3] %v201
    %s204 = scalar_lea.vmem [#allocation2], 20
    %v205 = vld [vmem:[%s204] sm:$0x3]
    %v206 = vld [vmem:[%s204 + $0x2] sm:$0x3]
    %v207 = vadd.f32 %v205, %v182
    %v208 = vadd.f32 %v206, %v183
    %209 = vst [vmem:[%s204] sm:$0x3] %v207
    %210 = vst [vmem:[%s204 + $0x2] sm:$0x3] %v208
    %v211 = vld [vmem:[%s108] sm:$0x3]
    %v212 = vld [vmem:[%s108 + $0x2] sm:$0x3]
    %v213 = vld [vmem:[%s126] sm:$0x3]
    %v214 = vld [vmem:[%s126 + $0x2] sm:$0x3]
    %v215 = vmul.f32 %v213, 100.0
    %v216 = vmul.f32 %v214, 100.0
    %v217 = vsub.f32 %v211, %v215
    %v218 = vsub.f32 %v212, %v216
    %v219 = vmul.f32 %v217, %v217
    %v220 = vmul.f32 %v218, %v218
    %s221 = scalar_lea.vmem [#allocation2], 24
    %v222 = vld [vmem:[%s221] sm:$0x3]
    %v223 = vld [vmem:[%s221 + $0x2] sm:$0x3]
    %v224 = vadd.f32 %v222, %v219
    %v225 = vadd.f32 %v223, %v220
    %226 = vst [vmem:[%s221] sm:$0x3] %v224
    %227 = vst [vmem:[%s221 + $0x2] sm:$0x3] %v225
    %s228 = scalar_lea.vmem [#allocation2], 28
    %v229 = vld [vmem:[%s228] sm:$0x3]
    %v230 = vld [vmem:[%s228 + $0x2] sm:$0x3]
    %v231 = vadd.f32 %v229, %v211
    %v232 = vadd.f32 %v230, %v212
    %233 = vst [vmem:[%s228] sm:$0x3] %v231
    %234 = vst [vmem:[%s228 + $0x2] sm:$0x3] %v232
    %s235 = scalar_lea.vmem [#allocation2], 32
    %v236 = vld [vmem:[%s235] sm:$0x3]
    %v237 = vld [vmem:[%s235 + $0x2] sm:$0x3]
    %v238 = vadd.f32 %v236, %v213
    %v239 = vadd.f32 %v237, %v214
    %240 = vst [vmem:[%s235] sm:$0x3] %v238
    %241 = vst [vmem:[%s235 + $0x2] sm:$0x3] %v239
    // Predicated region
    $region38: #{tpu_custom_call.1} parent=1 // pred_check
      %p242 = pneg %p128
    $region39: #{tpu_custom_call.1} parent=1 // pred_check_branch
      %244 = sbr.rel (%p242) target = $region41
    $region40: #{tpu_custom_call.1} parent=1 // pred_region
      %v245 = vld [vmem:[#allocation2] sm:$0x3]
      %v246 = vld [vmem:[#allocation2 + $0x2] sm:$0x3]
      %vm247 = vcmask 1041408
      %v248 = vsel %vm247, %v245, 0.0
      %v249 = vrot.slane %v248, 4
      %v250 = vadd.f32 %v248, %v249
      %v251 = vrot.slane %v250, 2
      %v252 = vadd.f32 %v250, %v251
      %v253 = vrot.slane %v252, 1
      %v254 = vadd.f32 %v252, %v253
      %v255 = vsel %vm247, %v246, 0.0
      %v256 = vrot.slane %v255, 4
      %v257 = vadd.f32 %v255, %v256
      %v258 = vrot.slane %v257, 2
      %v259 = vadd.f32 %v257, %v258
      %v260 = vrot.slane %v259, 1
      %v261 = vadd.f32 %v259, %v260
      %vm264 = vcmask 1041409
      %v265 = vsel %vm264, %v261, %v254
      %v267 = vsel %vm247, %v265, 0.0
      %268 = vadd.xlane.f32.xlu0 %v267
      %v269 = vpop.xlane.xlu0 %268
      %vm270 = vcmask 1024
      %271 = vst.msk [vmem:[#allocation8] sm:$0x3] %vm270, %v269
      %v272 = vld [vmem:[%s166] sm:$0x3]
      %v273 = vld [vmem:[%s166 + $0x2] sm:$0x3]
      %v274 = vsel %vm247, %v272, 0.0
      %v275 = vrot.slane %v274, 4
      %v276 = vadd.f32 %v274, %v275
      %v277 = vrot.slane %v276, 2
      %v278 = vadd.f32 %v276, %v277
      %v279 = vrot.slane %v278, 1
      %v280 = vadd.f32 %v278, %v279
      %v281 = vsel %vm247, %v273, 0.0
      %v282 = vrot.slane %v281, 4
      %v283 = vadd.f32 %v281, %v282
      %v284 = vrot.slane %v283, 2
      %v285 = vadd.f32 %v283, %v284
      %v286 = vrot.slane %v285, 1
      %v287 = vadd.f32 %v285, %v286
      %v290 = vsel %vm264, %v287, %v280
      %v292 = vsel %vm247, %v290, 0.0
      %293 = vadd.xlane.f32.xlu0 %v292
      %v294 = vpop.xlane.xlu0 %293
      %vm295 = vcmask 9224
      %296 = vst.msk [vmem:[#allocation8] sm:$0x3] %vm295, %v294
      %v297 = vld [vmem:[%s173] sm:$0x3]
      %v298 = vld [vmem:[%s173 + $0x2] sm:$0x3]
      %v299 = vsel %vm247, %v297, 0.0
      %v300 = vrot.slane %v299, 4
      %v301 = vadd.f32 %v299, %v300
      %v302 = vrot.slane %v301, 2
      %v303 = vadd.f32 %v301, %v302
      %v304 = vrot.slane %v303, 1
      %v305 = vadd.f32 %v303, %v304
      %v306 = vsel %vm247, %v298, 0.0
      %v307 = vrot.slane %v306, 4
      %v308 = vadd.f32 %v306, %v307
      %v309 = vrot.slane %v308, 2
      %v310 = vadd.f32 %v308, %v309
      %v311 = vrot.slane %v310, 1
      %v312 = vadd.f32 %v310, %v311
      %v315 = vsel %vm264, %v312, %v305
      %v317 = vsel %vm247, %v315, 0.0
      %318 = vadd.xlane.f32.xlu0 %v317
      %v319 = vpop.xlane.xlu0 %318
      %vm320 = vcmask 17424
      %321 = vst.msk [vmem:[#allocation8] sm:$0x3] %vm320, %v319
      %v322 = vld [vmem:[%s190] sm:$0x3]
      %v323 = vld [vmem:[%s190 + $0x2] sm:$0x3]
      %v324 = vsel %vm247, %v322, 0.0
      %v325 = vrot.slane %v324, 4
      %v326 = vadd.f32 %v324, %v325
      %v327 = vrot.slane %v326, 2
      %v328 = vadd.f32 %v326, %v327
      %v329 = vrot.slane %v328, 1
      %v330 = vadd.f32 %v328, %v329
      %v331 = vsel %vm247, %v323, 0.0
      %v332 = vrot.slane %v331, 4
      %v333 = vadd.f32 %v331, %v332
      %v334 = vrot.slane %v333, 2
      %v335 = vadd.f32 %v333, %v334
      %v336 = vrot.slane %v335, 1
      %v337 = vadd.f32 %v335, %v336
      %v340 = vsel %vm264, %v337, %v330
      %v342 = vsel %vm247, %v340, 0.0
      %343 = vadd.xlane.f32.xlu0 %v342
      %v344 = vpop.xlane.xlu0 %343
      %s345 = scalar_lea.vmem [#allocation8], 2
      %346 = vst.msk [vmem:[%s345] sm:$0x3] %vm270, %v344
      %v347 = vld [vmem:[%s197] sm:$0x3]
      %v348 = vld [vmem:[%s197 + $0x2] sm:$0x3]
      %v349 = vsel %vm247, %v347, 0.0
      %v350 = vrot.slane %v349, 4
      %v351 = vadd.f32 %v349, %v350
      %v352 = vrot.slane %v351, 2
      %v353 = vadd.f32 %v351, %v352
      %v354 = vrot.slane %v353, 1
      %v355 = vadd.f32 %v353, %v354
      %v356 = vsel %vm247, %v348, 0.0
      %v357 = vrot.slane %v356, 4
      %v358 = vadd.f32 %v356, %v357
      %v359 = vrot.slane %v358, 2
      %v360 = vadd.f32 %v358, %v359
      %v361 = vrot.slane %v360, 1
      %v362 = vadd.f32 %v360, %v361
      %v365 = vsel %vm264, %v362, %v355
      %v367 = vsel %vm247, %v365, 0.0
      %368 = vadd.xlane.f32.xlu0 %v367
      %v369 = vpop.xlane.xlu0 %368
      %370 = vst.msk [vmem:[%s345] sm:$0x3] %vm295, %v369
      %v371 = vld [vmem:[%s204] sm:$0x3]
      %v372 = vld [vmem:[%s204 + $0x2] sm:$0x3]
      %v373 = vsel %vm247, %v371, 0.0
      %v374 = vrot.slane %v373, 4
      %v375 = vadd.f32 %v373, %v374
      %v376 = vrot.slane %v375, 2
      %v377 = vadd.f32 %v375, %v376
      %v378 = vrot.slane %v377, 1
      %v379 = vadd.f32 %v377, %v378
      %v380 = vsel %vm247, %v372, 0.0
      %v381 = vrot.slane %v380, 4
      %v382 = vadd.f32 %v380, %v381
      %v383 = vrot.slane %v382, 2
      %v384 = vadd.f32 %v382, %v383
      %v385 = vrot.slane %v384, 1
      %v386 = vadd.f32 %v384, %v385
      %v389 = vsel %vm264, %v386, %v379
      %v391 = vsel %vm247, %v389, 0.0
      %392 = vadd.xlane.f32.xlu0 %v391
      %v393 = vpop.xlane.xlu0 %392
      %394 = vst.msk [vmem:[%s345] sm:$0x3] %vm320, %v393
      %v395 = vld [vmem:[%s221] sm:$0x3]
      %v396 = vld [vmem:[%s221 + $0x2] sm:$0x3]
      %v397 = vsel %vm247, %v395, 0.0
      %v398 = vrot.slane %v397, 4
      %v399 = vadd.f32 %v397, %v398
      %v400 = vrot.slane %v399, 2
      %v401 = vadd.f32 %v399, %v400
      %v402 = vrot.slane %v401, 1
      %v403 = vadd.f32 %v401, %v402
      %v404 = vsel %vm247, %v396, 0.0
      %v405 = vrot.slane %v404, 4
      %v406 = vadd.f32 %v404, %v405
      %v407 = vrot.slane %v406, 2
      %v408 = vadd.f32 %v406, %v407
      %v409 = vrot.slane %v408, 1
      %v410 = vadd.f32 %v408, %v409
      %v413 = vsel %vm264, %v410, %v403
      %v415 = vsel %vm247, %v413, 0.0
      %416 = vadd.xlane.f32.xlu0 %v415
      %v417 = vpop.xlane.xlu0 %416
      %s418 = scalar_lea.vmem [#allocation8], 4
      %419 = vst.msk [vmem:[%s418] sm:$0x3] %vm270, %v417
      %v420 = vld [vmem:[%s228] sm:$0x3]
      %v421 = vld [vmem:[%s228 + $0x2] sm:$0x3]
      %v422 = vsel %vm247, %v420, 0.0
      %v423 = vrot.slane %v422, 4
      %v424 = vadd.f32 %v422, %v423
      %v425 = vrot.slane %v424, 2
      %v426 = vadd.f32 %v424, %v425
      %v427 = vrot.slane %v426, 1
      %v428 = vadd.f32 %v426, %v427
      %v429 = vsel %vm247, %v421, 0.0
      %v430 = vrot.slane %v429, 4
      %v431 = vadd.f32 %v429, %v430
      %v432 = vrot.slane %v431, 2
      %v433 = vadd.f32 %v431, %v432
      %v434 = vrot.slane %v433, 1
      %v435 = vadd.f32 %v433, %v434
      %v438 = vsel %vm264, %v435, %v428
      %v440 = vsel %vm247, %v438, 0.0
      %441 = vadd.xlane.f32.xlu0 %v440
      %v442 = vpop.xlane.xlu0 %441
      %443 = vst.msk [vmem:[%s418] sm:$0x3] %vm295, %v442
      %v444 = vld [vmem:[%s235] sm:$0x3]
      %v445 = vld [vmem:[%s235 + $0x2] sm:$0x3]
      %v446 = vsel %vm247, %v444, 0.0
      %v447 = vrot.slane %v446, 4
      %v448 = vadd.f32 %v446, %v447
      %v449 = vrot.slane %v448, 2
      %v450 = vadd.f32 %v448, %v449
      %v451 = vrot.slane %v450, 1
      %v452 = vadd.f32 %v450, %v451
      %v453 = vsel %vm247, %v445, 0.0
      %v454 = vrot.slane %v453, 4
      %v455 = vadd.f32 %v453, %v454
      %v456 = vrot.slane %v455, 2
      %v457 = vadd.f32 %v455, %v456
      %v458 = vrot.slane %v457, 1
      %v459 = vadd.f32 %v457, %v458
      %v462 = vsel %vm264, %v459, %v452
      %v464 = vsel %vm247, %v462, 0.0
      %465 = vadd.xlane.f32.xlu0 %v464
      %v466 = vpop.xlane.xlu0 %465
      %467 = vst.msk [vmem:[%s418] sm:$0x3] %vm320, %v466
    $region41: #{tpu_custom_call.1} parent=1 // pred_fallthru
      _
    // Predicated region
    $region42: #{tpu_custom_call.1} parent=1 // pred_check
      _
    $region43: #{tpu_custom_call.1} parent=1 // pred_check_branch
      %469 = sbr.rel (0) target = $region45
    $region44: #{tpu_custom_call.1} parent=1 // pred_region
      %s471 = ssub.s32 96, 96
      %472 = vsyncadd [#allocation5], %s471
      %s473 = sshll.u32 [#allocation8], 4
      %s474 = int_to_ptr.vmem [resolvable:$true] %s473
      %479 = dma.vmem_to_hbm [thread:$0]  %s474, 96, %s6, [#allocation5], 32, 32, 2
    $region45: #{tpu_custom_call.1} parent=1 // pred_fallthru
      _
    // Predicated region
    $region46: #{tpu_custom_call.1} parent=1 // pred_check
      _
    $region47: #{tpu_custom_call.1} parent=1 // pred_check_branch
      %481 = sbr.rel (0) target = $region49
    $region48: #{tpu_custom_call.1} parent=1 // pred_region
      %482 = dma.done [#allocation5], 96
    $region49: #{tpu_custom_call.1} parent=1 // pred_fallthru
      _
    %483 = vsyncpa [#allocation4], 1
    %484 = vsyncpa [#allocation7], 1
    %485 = vsyncpa [#allocation5], 1

</llo_original>
